<compile_context>
chip_gen: v7x
topology: tpu7x:2x2x1
jax: 0.10.0
libtpu: 0.0.40
codegen_flags: <defaults>
</compile_context>

<pallas_src>
import numpy as np
import jax
import jax.numpy as jnp
from jax import lax
from jax.experimental import pallas as pl
from jax.experimental.pallas import tpu as pltpu


def upscale_rowmm_kernel(x_ref, w_ref, b_ref, o_ref, xp_ref):
    # x_ref : (Nb, H, W*Cin)       bf16 activations, (w, ci) fused into the lane dim
    # w_ref : (3, W*Cin, W*Cout)   bf16 banded row-matmul weights, one per ky tap
    # b_ref : (1, W*Cout)          f32 bias tiled across w positions
    # o_ref : (Nb, H, W*Cout)      lane-dense output (ReLU applied), input dtype
    # xp_ref: (Nb*(H+2), W*Cin)    bf16 scratch: per image [zero row | H data rows | zero row]
    Nb, H, WCin = x_ref.shape
    WCout = o_ref.shape[2]
    Hp = H + 2                      # rows per image block in the scratch
    Mt = Nb * Hp - 2                # matmul M dimension (includes 2 junk rows / image gap)

    # Build the stacked, row-padded image in VMEM. Halo-only zeroing: the data rows are
    # fully overwritten every step, only the two separator rows per image are re-zeroed
    # (safe across grid steps / megacore sharding). Lane dim is full width (aligned).
    zrow = jnp.zeros((1, WCin), dtype=xp_ref.dtype)
    for n in range(Nb):                              # static, unrolled
        base = n * Hp
        xp_ref[base:base + 1, :] = zrow              # top halo of image n
        xp_ref[base + 1:base + 1 + H, :] = x_ref[n]  # data rows (bf16, no cast)
        xp_ref[base + H + 1:base + H + 2, :] = zrow  # bottom halo of image n

    # "Same" 3x3 conv as 3 row-matmuls on the MXU (bf16 x bf16 -> f32 accumulate).
    # Output rows come out directly in the lane-dense (W*Cout) layout.
    acc = jnp.dot(xp_ref[0:Mt, :], w_ref[0], preferred_element_type=jnp.float32)
    for ky in (1, 2):                                # static, unrolled
        acc = acc + jnp.dot(xp_ref[ky:ky + Mt, :], w_ref[ky],
                            preferred_element_type=jnp.float32)

    acc = jnp.maximum(acc + b_ref[...], 0.0).astype(o_ref.dtype)   # f32 bias + fused ReLU

    # Valid rows for image n are acc[n*Hp : n*Hp + H]; the 2 rows between images are junk
    # computed on the zero separators and are simply skipped.
    for n in range(Nb):                              # static, unrolled
        o_ref[n] = acc[n * Hp:n * Hp + H]


def _build_band_and_bias(wt, bias, W):
    """Banded row-matmul weight, built on host with numpy (no trace-time scatters).

    B[ky, win*Cin + ci, w*Cout + co] = w_hwio[ky, win-w+1, ci, co]  for |win - w| <= 1,
    with out-of-range width taps dropped (implicit zero padding in width).
    """
    wt_np = np.asarray(wt)
    Cin, Cout = wt_np.shape[0], wt_np.shape[1]
    # ConvTranspose2d(s=1,p=1,k=3) == "same" conv with spatially flipped weight and
    # swapped channel axes:  w_hwio[ky,kx,ci,co] = wt[ci,co,2-ky,2-kx].
    w_hwio = np.transpose(wt_np[:, :, ::-1, ::-1], (2, 3, 0, 1)).astype(np.float32)

    B = np.zeros((3, W * Cin, W * Cout), np.float32)
    for w in range(W):
        for kx in range(3):
            win = w + kx - 1
            if 0 <= win < W:
                B[:, win * Cin:(win + 1) * Cin, w * Cout:(w + 1) * Cout] = w_hwio[:, kx]

    b_dense = np.tile(np.asarray(bias).astype(np.float32), W).reshape(1, W * Cout)
    return jnp.asarray(B, dtype=jnp.bfloat16), jnp.asarray(b_dense, dtype=jnp.float32)


def upscale_block(x_nchw, wt, bias, scale_factor):
    """Pallas implementation of UpscaleBlock.forward.

    x_nchw : (N, Cin, H, W)
    wt     : (Cin, Cout, 3, 3)   PyTorch ConvTranspose2d weight layout
    bias   : (Cout,)
    returns: (N, Cout // r^2, H*r, W*r) in NCHW, matching PyTorch.
    """
    N, Cin, H, W = x_nchw.shape
    Cout = wt.shape[1]
    r = scale_factor
    assert Cout % (r * r) == 0
    C2 = Cout // (r * r)
    # Fail loudly if the lane-dense store path does not apply (review correctness note).
    assert (W * Cout) % 128 == 0, "W*Cout must be a multiple of 128 for lane-dense stores"

    # NCHW -> NHWC -> (N, H, W*Cin) in bf16 (cast fuses into this one wrapper pass).
    x2 = jnp.transpose(x_nchw, (0, 2, 3, 1)).reshape(N, H, W * Cin).astype(jnp.bfloat16)

    B, b_dense = _build_band_and_bias(wt, bias, W)

    # Batch tile: fold Nb images into one grid step so each dot has M = Nb*(H+2)-2
    # (largest divisor of N with M <= ~256). Grid over batch tiles is "parallel".
    Hp = H + 2
    Nb = 1
    for d in range(1, N + 1):
        if N % d == 0 and d * Hp <= 256:
            Nb = d
    grid = (N // Nb,)

    y = pl.pallas_call(
        upscale_rowmm_kernel,
        out_shape=jax.ShapeDtypeStruct((N, H, W * Cout), x_nchw.dtype),
        grid_spec=pltpu.PrefetchScalarGridSpec(
            num_scalar_prefetch=0,
            grid=grid,
            in_specs=[
                pl.BlockSpec((Nb, H, W * Cin), lambda t: (t, 0, 0)),
                pl.BlockSpec((3, W * Cin, W * Cout), lambda t: (0, 0, 0)),
                pl.BlockSpec((1, W * Cout), lambda t: (0, 0)),
            ],
            out_specs=pl.BlockSpec((Nb, H, W * Cout), lambda t: (t, 0, 0)),
            scratch_shapes=[pltpu.VMEM((Nb * Hp, W * Cin), jnp.bfloat16)],
        ),
        compiler_params=pltpu.CompilerParams(
            dimension_semantics=("parallel",),
            vmem_limit_bytes=32 * 1024 * 1024,   # explicit budget (fits v5e/v6e/v7x)
        ),
    )(x2, B, b_dense)

    # PixelShuffle directly from the (N, H, W*Cout) layout (single transpose pass).
    # Column index j = w*Cout + co with co = c2*r*r + dy*r + dx.
    y = y.reshape(N, H, W, C2, r, r)
    y = jnp.transpose(y, (0, 3, 1, 4, 2, 5))                   # (N, C2, H, r, W, r)
    return y.reshape(N, C2, H * r, W * r)


def _reference(x_nchw, wt, bias, scale_factor):
    """Pure-JAX f32 reference of the PyTorch forward (correctness check)."""
    w_oihw = jnp.transpose(wt[:, :, ::-1, ::-1], (1, 0, 2, 3))
    y = lax.conv_general_dilated(
        x_nchw, w_oihw, window_strides=(1, 1), padding=((1, 1), (1, 1)),
        dimension_numbers=("NCHW", "OIHW", "NCHW"))
    y = y + bias[None, :, None, None]
    N, C, H, W = y.shape
    r = scale_factor
    C2 = C // (r * r)
    y = y.reshape(N, C2, r, r, H, W)
    y = jnp.transpose(y, (0, 1, 4, 2, 5, 3)).reshape(N, C2, H * r, W * r)
    return jnp.maximum(y, 0.0)


if __name__ == "__main__":
    # Small, module-consistent shapes: in_channels=8, out_channels=16, scale=2.
    # (W*Cout = 8*16 = 128 -> the kernel output is exactly one lane-dense MXU tile.)
    N, Cin, H, W = 2, 8, 8, 8
    Cout, r = 16, 2

    key = jax.random.PRNGKey(0)
    kx, kw, kb = jax.random.split(key, 3)
    x = jax.random.normal(kx, (N, Cin, H, W), jnp.float32)
    # Deterministic synthetic ConvTranspose2d parameters (PyTorch shapes).
    wt = 0.1 * jax.random.normal(kw, (Cin, Cout, 3, 3), jnp.float32)
    bias = 0.1 * jax.random.normal(kb, (Cout,), jnp.float32)

    out = jax.block_until_ready(upscale_block(x, wt, bias, r))
    ref = jax.block_until_ready(_reference(x, wt, bias, r))

    assert out.shape == (N, Cout // (r * r), H * r, W * r), out.shape
    # bf16 MXU operands with f32 accumulation: loosened tolerance (expected quantization).
    assert jnp.allclose(out, ref, atol=5e-2, rtol=5e-2), float(jnp.abs(out - ref).max())

    print("KERNEL_OK")
</pallas_src>

<mosaic_0001>
module attributes {stable_mosaic.version = 11 : i64} {
  func.func @upscale_rowmm_kernel(%arg0: i32, %arg1: memref<2x8x64xbf16, #tpu.memory_space<vmem>>, %arg2: memref<3x64x128xbf16, #tpu.memory_space<vmem>>, %arg3: memref<1x128xf32, #tpu.memory_space<vmem>>, %arg4: memref<2x8x128xf32, #tpu.memory_space<vmem>>, %arg5: memref<20x64xbf16, #tpu.memory_space<vmem>>) attributes {dimension_semantics = [#tpu.dimension_semantics<parallel>], iteration_bounds = array<i64: 1>, scalar_prefetch = 0 : i64, scratch_operands = 1 : i64, tpu.core_type = #tpu.core_type<tc>, window_params = [{transform_indices = @transform_0, window_bounds = array<i64: 2, 8, 64>}, {pipeline_mode = #tpu.pipeline_mode<synchronous>, transform_indices = @transform_1, window_bounds = array<i64: 3, 64, 128>}, {pipeline_mode = #tpu.pipeline_mode<synchronous>, transform_indices = @transform_2, window_bounds = array<i64: 1, 128>}, {transform_indices = @transform_3, window_bounds = array<i64: 2, 8, 128>}]} {
    %cst = arith.constant 0.000000e+00 : bf16
    %0 = vector.broadcast %cst : bf16 to vector<1x64xbf16>
    %c0 = arith.constant 0 : index
    %c0_0 = arith.constant 0 : index
    %1 = vector.load %arg5[%c0, %c0_0] : memref<20x64xbf16, #tpu.memory_space<vmem>>, vector<1x64xbf16>
    tpu.vector_store %arg5[%c0, %c0_0], %0 {strides = array<i32>} : memref<20x64xbf16, #tpu.memory_space<vmem>>, vector<1x64xbf16>,
    %c0_1 = arith.constant 0 : index
    %c0_2 = arith.constant 0 : index
    %c0_3 = arith.constant 0 : index
    %2 = vector.load %arg1[%c0_1, %c0_2, %c0_3] : memref<2x8x64xbf16, #tpu.memory_space<vmem>>, vector<1x8x64xbf16>
    %3 = vector.shape_cast %2 : vector<1x8x64xbf16> to vector<8x64xbf16>
    %c1 = arith.constant 1 : index
    %c0_4 = arith.constant 0 : index
    %4 = vector.load %arg5[%c1, %c0_4] : memref<20x64xbf16, #tpu.memory_space<vmem>>, vector<8x64xbf16>
    tpu.vector_store %arg5[%c1, %c0_4], %3 {strides = array<i32>} : memref<20x64xbf16, #tpu.memory_space<vmem>>, vector<8x64xbf16>,
    %c9 = arith.constant 9 : index
    %c0_5 = arith.constant 0 : index
    %5 = vector.load %arg5[%c9, %c0_5] : memref<20x64xbf16, #tpu.memory_space<vmem>>, vector<1x64xbf16>
    tpu.vector_store %arg5[%c9, %c0_5], %0 {strides = array<i32>} : memref<20x64xbf16, #tpu.memory_space<vmem>>, vector<1x64xbf16>,
    %c10 = arith.constant 10 : index
    %c0_6 = arith.constant 0 : index
    %6 = vector.load %arg5[%c10, %c0_6] : memref<20x64xbf16, #tpu.memory_space<vmem>>, vector<1x64xbf16>
    tpu.vector_store %arg5[%c10, %c0_6], %0 {strides = array<i32>} : memref<20x64xbf16, #tpu.memory_space<vmem>>, vector<1x64xbf16>,
    %c1_7 = arith.constant 1 : index
    %c0_8 = arith.constant 0 : index
    %c0_9 = arith.constant 0 : index
    %7 = vector.load %arg1[%c1_7, %c0_8, %c0_9] : memref<2x8x64xbf16, #tpu.memory_space<vmem>>, vector<1x8x64xbf16>
    %8 = vector.shape_cast %7 : vector<1x8x64xbf16> to vector<8x64xbf16>
    %c11 = arith.constant 11 : index
    %c0_10 = arith.constant 0 : index
    %9 = vector.load %arg5[%c11, %c0_10] : memref<20x64xbf16, #tpu.memory_space<vmem>>, vector<8x64xbf16>
    tpu.vector_store %arg5[%c11, %c0_10], %8 {strides = array<i32>} : memref<20x64xbf16, #tpu.memory_space<vmem>>, vector<8x64xbf16>,
    %c19 = arith.constant 19 : index
    %c0_11 = arith.constant 0 : index
    %10 = vector.load %arg5[%c19, %c0_11] : memref<20x64xbf16, #tpu.memory_space<vmem>>, vector<1x64xbf16>
    tpu.vector_store %arg5[%c19, %c0_11], %0 {strides = array<i32>} : memref<20x64xbf16, #tpu.memory_space<vmem>>, vector<1x64xbf16>,
    %c0_12 = arith.constant 0 : index
    %c0_13 = arith.constant 0 : index
    %11 = vector.load %arg5[%c0_12, %c0_13] : memref<20x64xbf16, #tpu.memory_space<vmem>>, vector<18x64xbf16>
    %c0_14 = arith.constant 0 : index
    %c0_15 = arith.constant 0 : index
    %c0_16 = arith.constant 0 : index
    %12 = vector.load %arg2[%c0_14, %c0_15, %c0_16] : memref<3x64x128xbf16, #tpu.memory_space<vmem>>, vector<1x64x128xbf16>
    %13 = vector.shape_cast %12 : vector<1x64x128xbf16> to vector<64x128xbf16>
    %cst_17 = arith.constant dense<0.000000e+00> : vector<18x128xf32>
    %14 = tpu.matmul %11, %13, %cst_17 {dimension_numbers = #tpu.dot_dimension_numbers<[1], [0], [0], [1], [0, 0, 1, 1], [], []>} : vector<18x64xbf16>, vector<64x128xbf16>, vector<18x128xf32> -> vector<18x128xf32>
    %c1_18 = arith.constant 1 : index
    %c0_19 = arith.constant 0 : index
    %15 = vector.load %arg5[%c1_18, %c0_19] : memref<20x64xbf16, #tpu.memory_space<vmem>>, vector<18x64xbf16>
    %c1_20 = arith.constant 1 : index
    %c0_21 = arith.constant 0 : index
    %c0_22 = arith.constant 0 : index
    %16 = vector.load %arg2[%c1_20, %c0_21, %c0_22] : memref<3x64x128xbf16, #tpu.memory_space<vmem>>, vector<1x64x128xbf16>
    %17 = vector.shape_cast %16 : vector<1x64x128xbf16> to vector<64x128xbf16>
    %cst_23 = arith.constant dense<0.000000e+00> : vector<18x128xf32>
    %18 = tpu.matmul %15, %17, %cst_23 {dimension_numbers = #tpu.dot_dimension_numbers<[1], [0], [0], [1], [0, 0, 1, 1], [], []>} : vector<18x64xbf16>, vector<64x128xbf16>, vector<18x128xf32> -> vector<18x128xf32>
    %19 = arith.addf %14, %18 : vector<18x128xf32>
    %c2 = arith.constant 2 : index
    %c0_24 = arith.constant 0 : index
    %20 = vector.load %arg5[%c2, %c0_24] : memref<20x64xbf16, #tpu.memory_space<vmem>>, vector<18x64xbf16>
    %c2_25 = arith.constant 2 : index
    %c0_26 = arith.constant 0 : index
    %c0_27 = arith.constant 0 : index
    %21 = vector.load %arg2[%c2_25, %c0_26, %c0_27] : memref<3x64x128xbf16, #tpu.memory_space<vmem>>, vector<1x64x128xbf16>
    %22 = vector.shape_cast %21 : vector<1x64x128xbf16> to vector<64x128xbf16>
    %cst_28 = arith.constant dense<0.000000e+00> : vector<18x128xf32>
    %23 = tpu.matmul %20, %22, %cst_28 {dimension_numbers = #tpu.dot_dimension_numbers<[1], [0], [0], [1], [0, 0, 1, 1], [], []>} : vector<18x64xbf16>, vector<64x128xbf16>, vector<18x128xf32> -> vector<18x128xf32>
    %24 = arith.addf %19, %23 : vector<18x128xf32>
    %c0_29 = arith.constant 0 : index
    %c0_30 = arith.constant 0 : index
    %25 = vector.load %arg3[%c0_29, %c0_30] : memref<1x128xf32, #tpu.memory_space<vmem>>, vector<1x128xf32>
    %26 = vector.broadcast %25 : vector<1x128xf32> to vector<18x128xf32>
    %27 = arith.addf %24, %26 : vector<18x128xf32>
    %cst_31 = arith.constant 0.000000e+00 : f32
    %28 = vector.broadcast %cst_31 : f32 to vector<18x128xf32>
    %29 = arith.maximumf %27, %28 : vector<18x128xf32>
    %30 = vector.extract_strided_slice %29 {offsets = [0, 0], sizes = [8, 128], strides = [1, 1]} : vector<18x128xf32> to vector<8x128xf32>
    %c0_32 = arith.constant 0 : index
    %c0_33 = arith.constant 0 : index
    %c0_34 = arith.constant 0 : index
    %31 = vector.load %arg4[%c0_32, %c0_33, %c0_34] : memref<2x8x128xf32, #tpu.memory_space<vmem>>, vector<1x8x128xf32>
    %32 = vector.shape_cast %31 : vector<1x8x128xf32> to vector<8x128xf32>
    %33 = vector.shape_cast %30 : vector<8x128xf32> to vector<1x8x128xf32>
    tpu.vector_store %arg4[%c0_32, %c0_33, %c0_34], %33 {strides = array<i32>} : memref<2x8x128xf32, #tpu.memory_space<vmem>>, vector<1x8x128xf32>,
    %34 = vector.extract_strided_slice %29 {offsets = [10, 0], sizes = [8, 128], strides = [1, 1]} : vector<18x128xf32> to vector<8x128xf32>
    %c1_35 = arith.constant 1 : index
    %c0_36 = arith.constant 0 : index
    %c0_37 = arith.constant 0 : index
    %35 = vector.load %arg4[%c1_35, %c0_36, %c0_37] : memref<2x8x128xf32, #tpu.memory_space<vmem>>, vector<1x8x128xf32>
    %36 = vector.shape_cast %35 : vector<1x8x128xf32> to vector<8x128xf32>
    %37 = vector.shape_cast %34 : vector<8x128xf32> to vector<1x8x128xf32>
    tpu.vector_store %arg4[%c1_35, %c0_36, %c0_37], %37 {strides = array<i32>} : memref<2x8x128xf32, #tpu.memory_space<vmem>>, vector<1x8x128xf32>,
    return
  }
  func.func @transform_0(%arg0: i32) -> (i32, i32, i32) {
    %c0_i32 = arith.constant 0 : i32
    %c0_i32_0 = arith.constant 0 : i32
    %c0_i32_1 = arith.constant 0 : i32
    return %arg0, %c0_i32, %c0_i32_0 : i32, i32, i32
  }
  func.func @transform_1(%arg0: i32) -> (i32, i32, i32) {
    %c0_i32 = arith.constant 0 : i32
    %c0_i32_0 = arith.constant 0 : i32
    %c0_i32_1 = arith.constant 0 : i32
    %c0_i32_2 = arith.constant 0 : i32
    return %c0_i32, %c0_i32_0, %c0_i32_1 : i32, i32, i32
  }
  func.func @transform_2(%arg0: i32) -> (i32, i32) {
    %c0_i32 = arith.constant 0 : i32
    %c0_i32_0 = arith.constant 0 : i32
    %c0_i32_1 = arith.constant 0 : i32
    return %c0_i32, %c0_i32_0 : i32, i32
  }
  func.func @transform_3(%arg0: i32) -> (i32, i32, i32) {
    %c0_i32 = arith.constant 0 : i32
    %c0_i32_0 = arith.constant 0 : i32
    %c0_i32_1 = arith.constant 0 : i32
    return %arg0, %c0_i32, %c0_i32_0 : i32, i32, i32
  }
}

</mosaic_0001>

<llo_original>
// kernel: tpu_custom_call.1
$region0: #{tpu_custom_call.1}
  #allocation0 [shape = 'u32[]', space=smem, size = 0x4, offset = 0x4, fixed_abs, tag = 'smem constant byte address 0x4 - core index']
  #allocation1 [shape = 'u32[144,128]{1,0:T(1,128)}', space=vmem, size = 0x12000, scoped, tag = 'internal scratch']
  #allocation2 [shape = 'bf16[20,64]{1,0:T(8,128)(2,1)}', space=vmem, size = 0x1800, scoped, tag = 'scratch operand']
  %s0 = inlined_call_operand.hbm [shape: bf16[2,8,64], index: 0, kind: input, shape index: {}]
  %s1 = inlined_call_operand.hbm [shape: bf16[3,64,128], index: 1, kind: input, shape index: {}]
  %s2 = inlined_call_operand.vmem [shape: f32[1,128], index: 2, kind: input, shape index: {}]
  %s3 = inlined_call_operand.hbm [shape: f32[2,8,128], index: 3, kind: output, shape index: {}]
  %s4 = sld [smem:[#allocation0]]
  $region30: #{tpu_custom_call.1} parent=0
    _
  %s6 = ssub.s32 1, %s4
  %s7 = scalar_select 0, %s6, %s4
  $region1: #{tpu_custom_call.1} parent=0
    #allocation3 [shape = 'u8[4096]{0}', space=vmem, size = 0x1000, scoped, tag = 'input window, operand 0, single buffered']
    #allocation4 [shape = 's32[1]{0}', space=sflag, size = 0x4, scoped, tag = 'scoped memory for tpu_custom_call.1']
    #allocation5 [shape = 's32[1]{0}', space=sflag, size = 0x4, scoped, tag = 'scoped memory for tpu_custom_call.1']
    #allocation6 [shape = 'u8[49152]{0}', space=vmem, size = 0xc000, scoped, tag = 'input window, operand 1, single buffered']
    #allocation7 [shape = 's32[1]{0}', space=sflag, size = 0x4, scoped, tag = 'scoped memory for tpu_custom_call.1']
    #allocation8 [shape = 'u8[8192]{0}', space=vmem, size = 0x2000, scoped, tag = 'output window, operand 0, single buffered']
    %8 = vsyncpa [#allocation4], 0
    %9 = vsyncpa [#allocation7], 0
    %10 = vsyncpa [#allocation5], 0
    // Predicated region
    $region2: #{tpu_custom_call.1} parent=1 // pred_check
      _
    $region3: #{tpu_custom_call.1} parent=1 // pred_check_branch
      %12 = sbr.rel (0) target = $region5
    $region4: #{tpu_custom_call.1} parent=1 // pred_region
      %s14 = ssub.s32 128, 128
      %15 = vsyncadd [#allocation4], %s14
      %s16 = sshll.u32 [#allocation3], 4
      %s17 = int_to_ptr.vmem [resolvable:$true] %s16
      %22 = dma.hbm_to_vmem [thread:$0]  %s0, 128, %s17, [#allocation4], 64, 64, 4
    $region5: #{tpu_custom_call.1} parent=1 // pred_fallthru
      _
    // Predicated region
    $region6: #{tpu_custom_call.1} parent=1 // pred_check
      _
    $region7: #{tpu_custom_call.1} parent=1 // pred_check_branch
      %24 = sbr.rel (0) target = $region9
    $region8: #{tpu_custom_call.1} parent=1 // pred_region
      %s26 = ssub.s32 1536, 1536
      %27 = vsyncadd [#allocation7], %s26
      %s28 = sshll.u32 [#allocation6], 4
      %s29 = int_to_ptr.vmem [resolvable:$true] %s28
      %34 = dma.hbm_to_vmem [thread:$0]  %s1, 1536, %s29, [#allocation7], 64, 64, 4
    $region9: #{tpu_custom_call.1} parent=1 // pred_fallthru
      _
    // Predicated region
    $region10: #{tpu_custom_call.1} parent=1 // pred_check
      _
    $region11: #{tpu_custom_call.1} parent=1 // pred_check_branch
      %36 = sbr.rel (0) target = $region13
    $region12: #{tpu_custom_call.1} parent=1 // pred_region
      _
    $region13: #{tpu_custom_call.1} parent=1 // pred_fallthru
      _
    // Predicated region
    $region14: #{tpu_custom_call.1} parent=1 // pred_check
      _
    $region15: #{tpu_custom_call.1} parent=1 // pred_check_branch
      %38 = sbr.rel (0) target = $region17
    $region16: #{tpu_custom_call.1} parent=1 // pred_region
      %39 = dma.done [#allocation4], 128
    $region17: #{tpu_custom_call.1} parent=1 // pred_fallthru
      _
    // Predicated region
    $region18: #{tpu_custom_call.1} parent=1 // pred_check
      _
    $region19: #{tpu_custom_call.1} parent=1 // pred_check_branch
      %41 = sbr.rel (0) target = $region21
    $region20: #{tpu_custom_call.1} parent=1 // pred_region
      %42 = dma.done [#allocation7], 1536
    $region21: #{tpu_custom_call.1} parent=1 // pred_fallthru
      _
    %vm44 = vcmask 516096
    %vm45 = vsmask.f32 256
    %vm46 = vmand %vm44, %vm45
    %v47 = vld [vmem:[#allocation2] sm:$0x1]
    %v48 = vsel %vm46, 0, %v47
    %49 = vst [vmem:[#allocation2] sm:$0x1] %v48
    %v50 = vld [vmem:[#allocation3] sm:$0xf]
    %v52 = vshrl.u32 %v50, 16
    %v54 = vrot.slane %v52, 7
    %v55 = vshll.u32 %v50, 16
    %v57 = vor.u32 %v54, %v55
    %v58 = vrot.slane %v54, 4
    %vm61 = vcmask 519168
    %vm62 = vsmask.f32 7938
    %vm63 = vmand %vm61, %vm62
    %v64 = vld [vmem:[#allocation2] sm:$0xf]
    %v65 = vsel %vm63, %v57, %v64
    %66 = vst [vmem:[#allocation2] sm:$0xf] %v65
    %v67 = vld [vmem:[#allocation2 + $0x4] sm:$0x1]
    %v68 = vsel %vm46, %v58, %v67
    %69 = vst [vmem:[#allocation2 + $0x4] sm:$0x1] %v68
    %vm70 = vmand %vm44, %vm62
    %v71 = vld [vmem:[#allocation2 + $0x4] sm:$0x1]
    %v72 = vsel %vm70, 0, %v71
    %73 = vst [vmem:[#allocation2 + $0x4] sm:$0x1] %v72
    %vm74 = vcmask 517121
    %vm75 = vsmask.f32 1280
    %vm76 = vmand %vm74, %vm75
    %v77 = vld [vmem:[#allocation2 + $0x4] sm:$0x2]
    %v78 = vsel %vm76, 0, %v77
    %79 = vst [vmem:[#allocation2 + $0x4] sm:$0x2] %v78
    %s80 = scalar_lea.vmem [#allocation3], 4
    %v81 = vld [vmem:[%s80] sm:$0xf]
    %v83 = vshrl.u32 %v81, 16
    %v85 = vrot.slane %v83, 6
    %v86 = vshll.u32 %v81, 16
    %v88 = vrot.slane %v86, 7
    %v89 = vor.u32 %v85, %v88
    %v90 = vrot.slane %v89, 4
    %vm93 = vcmask 519169
    %vm94 = vsmask.f32 7942
    %vm95 = vmand %vm93, %vm94
    %v96 = vld [vmem:[#allocation2 + $0x4] sm:$0xe]
    %v97 = vsel %vm95, %v89, %v96
    %98 = vst [vmem:[#allocation2 + $0x4] sm:$0xe] %v97
    %vm99 = vcmask 517120
    %vm100 = vmand %vm99, %vm75
    %v101 = vld [vmem:[#allocation2 + $0x8] sm:$0x3]
    %v102 = vsel %vm100, %v90, %v101
    %103 = vst [vmem:[#allocation2 + $0x8] sm:$0x3] %v102
    %vm104 = vmand %vm74, %vm94
    %v105 = vld [vmem:[#allocation2 + $0x8] sm:$0x2]
    %v106 = vsel %vm104, 0, %v105
    %107 = vst [vmem:[#allocation2 + $0x8] sm:$0x2] %v106
    %v108 = vld [vmem:[#allocation2] sm:$0xf]
    %v109 = vld [vmem:[#allocation2 + $0x4] sm:$0xf]
    %v110 = vld [vmem:[#allocation2 + $0x8] sm:$0x1]
    %v111 = vld [vmem:[#allocation6] sm:$0xf]
    %v112 = vld [vmem:[#allocation6 + $0x4] sm:$0xf]
    %v113 = vld [vmem:[#allocation6 + $0x8] sm:$0xf]
    %v114 = vld [vmem:[#allocation6 + $0xc] sm:$0xf]
    %v115 = vld [vmem:[#allocation6 + $0x10] sm:$0xf]
    %v116 = vld [vmem:[#allocation6 + $0x14] sm:$0xf]
    %v117 = vld [vmem:[#allocation6 + $0x18] sm:$0xf]
    %v118 = vld [vmem:[#allocation6 + $0x1c] sm:$0xf]
    %v119 = vld [vmem:[#allocation2 + $0x8] sm:$0x3]
    %s120 = scalar_lea.vmem [#allocation6], 32
    %v121 = vld [vmem:[%s120] sm:$0xf]
    %v122 = vld [vmem:[%s120 + $0x4] sm:$0xf]
    %v123 = vld [vmem:[%s120 + $0x8] sm:$0xf]
    %v124 = vld [vmem:[%s120 + $0xc] sm:$0xf]
    %v125 = vld [vmem:[%s120 + $0x10] sm:$0xf]
    %v126 = vld [vmem:[%s120 + $0x14] sm:$0xf]
    %v127 = vld [vmem:[%s120 + $0x18] sm:$0xf]
    %v128 = vld [vmem:[%s120 + $0x1c] sm:$0xf]
    %v132 = vunpack.c.l.b16 %v108
    %v133 = vunpack.c.l.b16 %v109
    %v134 = vunpack.c.l.b16 %v119
    %v135 = vpack.c.b16 %v133, %v132
    %v136 = vpack.c.b16 %v134, %v134
    %vm137 = vsmask.f32 7424
    %v139 = vshrl.u32 %v135, 16
    %v141 = vshll.u32 %v135, 16
    %v143 = vrot.slane %v141, 1
    %v144 = vor.u32 %v139, %v143
    %v146 = vshll.u32 %v136, 16
    %v148 = vrot.slane %v146, 1
    %v149 = vsel %vm137, %v144, %v148
    %v150 = vshrl.u32 %v136, 16
    %v152 = vor.u32 %v150, %v148
    %v161 = vunpack.c.l.b16 %v121
    %v162 = vunpack.c.l.b16 %v122
    %v163 = vunpack.c.l.b16 %v123
    %v164 = vunpack.c.l.b16 %v124
    %v165 = vunpack.c.l.b16 %v125
    %v166 = vunpack.c.l.b16 %v126
    %v167 = vunpack.c.l.b16 %v127
    %v168 = vunpack.c.l.b16 %v128
    %v169 = vpack.c.b16 %v162, %v161
    %v170 = vpack.c.b16 %v164, %v163
    %v171 = vpack.c.b16 %v166, %v165
    %v172 = vpack.c.b16 %v168, %v167
    %vm177 = vcmask 523264
    %v179 = vsel %vm177, %v149, 0
    %v182 = vsel %vm177, %v152, 0
    %184 = vmatprep.subr.bf16.mxu0 0
    %185 = vmatpush1.bf16.msra.mxu0 %v169
    %186 = vmatprep.subr.bf16.mxu0 0
    %187 = vmatpush1.bf16.msra.mxu0 %v170
    %188 = vmatprep.subr.bf16.mxu0 0
    %189 = vmatpush1.bf16.msra.mxu0 %v171
    %190 = vmatprep.subr.bf16.mxu0 0
    %191 = vmatpush1.bf16.msra.mxu0 %v172
    %192 = vmatprep.subr.bf16.mxu0 0
    %193 = vmatpush1.bf16.msra.mxu0 0
    %194 = vmatprep.subr.bf16.mxu0 0
    %195 = vmatpush1.bf16.msra.mxu0 0
    %196 = vmatprep.subr.bf16.mxu0 0
    %197 = vmatpush1.bf16.msra.mxu0 0
    %198 = vmatprep.subr.bf16.mxu0 0
    %199 = vmatpush1.bf16.msra.mxu0 0
    %200 = vmatprep.subr.bf16.mxu0 0
    %201 = vmatpush1.bf16.msra.mxu0 0
    %202 = vmatprep.subr.bf16.mxu0 0
    %203 = vmatpush1.bf16.msra.mxu0 0
    %204 = vmatprep.subr.bf16.mxu0 0
    %205 = vmatpush1.bf16.msra.mxu0 0
    %206 = vmatprep.subr.bf16.mxu0 0
    %207 = vmatpush1.bf16.msra.mxu0 0
    %208 = vmatprep.subr.bf16.mxu0 0
    %209 = vmatpush1.bf16.msra.mxu0 0
    %210 = vmatprep.subr.bf16.mxu0 0
    %211 = vmatpush1.bf16.msra.mxu0 0
    %212 = vmatprep.subr.bf16.mxu0 0
    %213 = vmatpush1.bf16.msra.mxu0 0
    %214 = vmatprep.subr.bf16.mxu0 0
    %215 = vmatpush1.bf16.msra.mxu0 0
    %216 = vmatprep.mubr.bf16.mxu0 0
    %217 = vmatmul.mubr.bf16.gmra.mrb[0].mxu0 %v179
    %v218 = vpop.f32.mrb[0].mxu0
    %v219 = vadd.f32 0.0, %v218
    %v220 = vpop.f32.mrb[0].mxu0
    %v221 = vpop.f32.mrb[0].mxu0
    %v222 = vadd.f32 0.0, %v221
    %v223 = vpop.f32.mrb[0].mxu0
    %224 = vmatprep.mubr.bf16.mxu0 0
    %225 = vmatmul.mubr.bf16.gmra.mrb[0].mxu0 %v182
    %v226 = vpop.f32.mrb[0].mxu0
    %v227 = vadd.f32 0.0, %v226
    %v228 = vpop.f32.mrb[0].mxu0
    %v229 = vpop.f32.mrb[0].mxu0
    %v230 = vpop.f32.mrb[0].mxu0
    %231 = vdwg.mxu0
    %v233 = vunpack.c.l.b16 %v110
    %v234 = vpack.c.b16 %v233, %v233
    %v243 = vunpack.c.l.b16 %v111
    %v244 = vunpack.c.l.b16 %v112
    %v245 = vunpack.c.l.b16 %v113
    %v246 = vunpack.c.l.b16 %v114
    %v247 = vunpack.c.l.b16 %v115
    %v248 = vunpack.c.l.b16 %v116
    %v249 = vunpack.c.l.b16 %v117
    %v250 = vunpack.c.l.b16 %v118
    %v251 = vpack.c.b16 %v244, %v243
    %v252 = vpack.c.b16 %v246, %v245
    %v253 = vpack.c.b16 %v248, %v247
    %v254 = vpack.c.b16 %v250, %v249
    %v259 = vsel %vm177, %v135, 0
    %v262 = vsel %vm177, %v234, 0
    %264 = vmatprep.subr.bf16.mxu0 0
    %265 = vmatpush1.bf16.msra.mxu0 %v251
    %266 = vmatprep.subr.bf16.mxu0 0
    %267 = vmatpush1.bf16.msra.mxu0 %v252
    %268 = vmatprep.subr.bf16.mxu0 0
    %269 = vmatpush1.bf16.msra.mxu0 %v253
    %270 = vmatprep.subr.bf16.mxu0 0
    %271 = vmatpush1.bf16.msra.mxu0 %v254
    %272 = vmatprep.subr.bf16.mxu0 0
    %273 = vmatpush1.bf16.msra.mxu0 0
    %274 = vmatprep.subr.bf16.mxu0 0
    %275 = vmatpush1.bf16.msra.mxu0 0
    %276 = vmatprep.subr.bf16.mxu0 0
    %277 = vmatpush1.bf16.msra.mxu0 0
    %278 = vmatprep.subr.bf16.mxu0 0
    %279 = vmatpush1.bf16.msra.mxu0 0
    %280 = vmatprep.subr.bf16.mxu0 0
    %281 = vmatpush1.bf16.msra.mxu0 0
    %282 = vmatprep.subr.bf16.mxu0 0
    %283 = vmatpush1.bf16.msra.mxu0 0
    %284 = vmatprep.subr.bf16.mxu0 0
    %285 = vmatpush1.bf16.msra.mxu0 0
    %286 = vmatprep.subr.bf16.mxu0 0
    %287 = vmatpush1.bf16.msra.mxu0 0
    %288 = vmatprep.subr.bf16.mxu0 0
    %289 = vmatpush1.bf16.msra.mxu0 0
    %290 = vmatprep.subr.bf16.mxu0 0
    %291 = vmatpush1.bf16.msra.mxu0 0
    %292 = vmatprep.subr.bf16.mxu0 0
    %293 = vmatpush1.bf16.msra.mxu0 0
    %294 = vmatprep.subr.bf16.mxu0 0
    %295 = vmatpush1.bf16.msra.mxu0 0
    %296 = vmatprep.mubr.bf16.mxu0 0
    %297 = vmatmul.mubr.bf16.gmra.mrb[0].mxu0 %v259
    %v298 = vpop.f32.mrb[0].mxu0
    %v299 = vadd.f32 %v219, %v298
    %v300 = vpop.f32.mrb[0].mxu0
    %v301 = vpop.f32.mrb[0].mxu0
    %v302 = vadd.f32 %v222, %v301
    %v303 = vpop.f32.mrb[0].mxu0
    %304 = vmatprep.mubr.bf16.mxu0 0
    %305 = vmatmul.mubr.bf16.gmra.mrb[0].mxu0 %v262
    %v306 = vpop.f32.mrb[0].mxu0
    %v307 = vadd.f32 %v227, %v306
    %v308 = vpop.f32.mrb[0].mxu0
    %v309 = vpop.f32.mrb[0].mxu0
    %v310 = vpop.f32.mrb[0].mxu0
    %311 = vdwg.mxu0
    %v312 = vld [vmem:[#allocation2] sm:$0xe]
    %s313 = scalar_lea.vmem [#allocation6], 64
    %v314 = vld [vmem:[%s313] sm:$0xf]
    %v315 = vld [vmem:[%s313 + $0x4] sm:$0xf]
    %v316 = vld [vmem:[%s313 + $0x8] sm:$0xf]
    %v317 = vld [vmem:[%s313 + $0xc] sm:$0xf]
    %v318 = vld [vmem:[%s313 + $0x10] sm:$0xf]
    %v319 = vld [vmem:[%s313 + $0x14] sm:$0xf]
    %v320 = vld [vmem:[%s313 + $0x18] sm:$0xf]
    %v321 = vld [vmem:[%s313 + $0x1c] sm:$0xf]
    %v323 = vunpack.c.l.b16 %v312
    %v324 = vpack.c.b16 %v133, %v323
    %vm325 = vcmask 1046528
    %v326 = vrot.slane %v324, 1
    %v327 = vrot.slane %v136, 1
    %v328 = vsel %vm325, %v326, %v327
    %v337 = vunpack.c.l.b16 %v314
    %v338 = vunpack.c.l.b16 %v315
    %v339 = vunpack.c.l.b16 %v316
    %v340 = vunpack.c.l.b16 %v317
    %v341 = vunpack.c.l.b16 %v318
    %v342 = vunpack.c.l.b16 %v319
    %v343 = vunpack.c.l.b16 %v320
    %v344 = vunpack.c.l.b16 %v321
    %v345 = vpack.c.b16 %v338, %v337
    %v346 = vpack.c.b16 %v340, %v339
    %v347 = vpack.c.b16 %v342, %v341
    %v348 = vpack.c.b16 %v344, %v343
    %v354 = vsel %vm177, %v328, 0
    %v357 = vsel %vm177, %v327, 0
    %359 = vmatprep.subr.bf16.mxu0 0
    %360 = vmatpush1.bf16.msra.mxu0 %v345
    %361 = vmatprep.subr.bf16.mxu0 0
    %362 = vmatpush1.bf16.msra.mxu0 %v346
    %363 = vmatprep.subr.bf16.mxu0 0
    %364 = vmatpush1.bf16.msra.mxu0 %v347
    %365 = vmatprep.subr.bf16.mxu0 0
    %366 = vmatpush1.bf16.msra.mxu0 %v348
    %367 = vmatprep.subr.bf16.mxu0 0
    %368 = vmatpush1.bf16.msra.mxu0 0
    %369 = vmatprep.subr.bf16.mxu0 0
    %370 = vmatpush1.bf16.msra.mxu0 0
    %371 = vmatprep.subr.bf16.mxu0 0
    %372 = vmatpush1.bf16.msra.mxu0 0
    %373 = vmatprep.subr.bf16.mxu0 0
    %374 = vmatpush1.bf16.msra.mxu0 0
    %375 = vmatprep.subr.bf16.mxu0 0
    %376 = vmatpush1.bf16.msra.mxu0 0
    %377 = vmatprep.subr.bf16.mxu0 0
    %378 = vmatpush1.bf16.msra.mxu0 0
    %379 = vmatprep.subr.bf16.mxu0 0
    %380 = vmatpush1.bf16.msra.mxu0 0
    %381 = vmatprep.subr.bf16.mxu0 0
    %382 = vmatpush1.bf16.msra.mxu0 0
    %383 = vmatprep.subr.bf16.mxu0 0
    %384 = vmatpush1.bf16.msra.mxu0 0
    %385 = vmatprep.subr.bf16.mxu0 0
    %386 = vmatpush1.bf16.msra.mxu0 0
    %387 = vmatprep.subr.bf16.mxu0 0
    %388 = vmatpush1.bf16.msra.mxu0 0
    %389 = vmatprep.subr.bf16.mxu0 0
    %390 = vmatpush1.bf16.msra.mxu0 0
    %391 = vmatprep.mubr.bf16.mxu0 0
    %392 = vmatmul.mubr.bf16.gmra.mrb[0].mxu0 %v354
    %v393 = vpop.f32.mrb[0].mxu0
    %v394 = vadd.f32 0.0, %v393
    %v395 = vpop.f32.mrb[0].mxu0
    %v396 = vpop.f32.mrb[0].mxu0
    %v397 = vadd.f32 0.0, %v396
    %v398 = vpop.f32.mrb[0].mxu0
    %399 = vmatprep.mubr.bf16.mxu0 0
    %400 = vmatmul.mubr.bf16.gmra.mrb[0].mxu0 %v357
    %v401 = vpop.f32.mrb[0].mxu0
    %v402 = vadd.f32 0.0, %v401
    %v403 = vpop.f32.mrb[0].mxu0
    %v404 = vpop.f32.mrb[0].mxu0
    %v405 = vpop.f32.mrb[0].mxu0
    %406 = vdwg.mxu0
    %v407 = vadd.f32 %v299, %v394
    %v408 = vadd.f32 %v302, %v397
    %v409 = vadd.f32 %v307, %v402
    %v410 = vld [vmem:[%s2] sm:$0x1]
    %v412 = vlaneseq
    %v413 = vshrl.u32 %v412, 7
    %v414 = vsub.s32 0, %v413
    %v415 = vrot.slane %v410, %v414
    %v417 = vadd.f32 %v407, %v415
    %v418 = vadd.f32 %v408, %v415
    %v419 = vadd.f32 %v409, %v415
    %v420 = vmax.f32 %v417, 0.0
    %v421 = vmax.f32 %v418, 0.0
    %v422 = vmax.f32 %v419, 0.0
    %423 = vst [vmem:[#allocation8] sm:$0xff] %v420
    %s424 = scalar_lea.vmem [#allocation8], 8
    %425 = vst [vmem:[%s424 - $0x2] sm:$0xfc] %v421
    %426 = vst [vmem:[%s424 + $0x6] sm:$0x3] %v422
    // Predicated region
    $region22: #{tpu_custom_call.1} parent=1 // pred_check
      _
    $region23: #{tpu_custom_call.1} parent=1 // pred_check_branch
      %428 = sbr.rel (0) target = $region25
    $region24: #{tpu_custom_call.1} parent=1 // pred_region
      %s430 = ssub.s32 256, 256
      %431 = vsyncadd [#allocation5], %s430
      %s432 = sshll.u32 [#allocation8], 4
      %s433 = int_to_ptr.vmem [resolvable:$true] %s432
      %438 = dma.vmem_to_hbm [thread:$0]  %s433, 256, %s3, [#allocation5], 128, 128, 8
    $region25: #{tpu_custom_call.1} parent=1 // pred_fallthru
      _
    // Predicated region
    $region26: #{tpu_custom_call.1} parent=1 // pred_check
      _
    $region27: #{tpu_custom_call.1} parent=1 // pred_check_branch
      %440 = sbr.rel (0) target = $region29
    $region28: #{tpu_custom_call.1} parent=1 // pred_region
      %441 = dma.done [#allocation5], 256
    $region29: #{tpu_custom_call.1} parent=1 // pred_fallthru
      _
    %442 = vsyncpa [#allocation4], 1
    %443 = vsyncpa [#allocation7], 1
    %444 = vsyncpa [#allocation5], 1

</llo_original>
